<compile_context>
chip_gen: v7x
topology: tpu7x:2x2x1
jax: 0.10.0
libtpu: 0.0.40
codegen_flags: <defaults>
</compile_context>

<pallas_src>
import jax
import jax.numpy as jnp
from jax.experimental import pallas as pl
from jax.experimental.pallas import tpu as pltpu

_HALO = 128  # lane-aligned halo width; supports kernel sizes K <= 129


def _round_up(a, b):
    return (a + b - 1) // b * b


def _posneg_conv1d_kernel(x_ref, h_ref, w_ref, b_ref, o_ref, col_ref):
    # x_ref : (C_in_p, TL)           main activation tile (lane-dense)
    # h_ref : (C_in_p, 128)          halo: next 128 input columns
    # w_ref : (C_out_p, 2*K*C_in_p)  [W+ | W-], k-major / c-minor flattening
    # b_ref : (C_out_p, 1)           original bias (clamp+ + clamp- == b)
    # o_ref : (C_out_p, TL)          output tile, TL % 128 == 0
    # col_ref: (2*K*C_in_p, TL)      VMEM scratch im2col block
    c_in_p = x_ref.shape[0]
    tl = o_ref.shape[-1]
    k = w_ref.shape[-1] // (2 * c_in_p)

    # Clamp ONCE over the (tile + halo) window; all K windows reuse these.
    xw = jnp.concatenate([x_ref[...], h_ref[...]], axis=1)   # (C_in_p, TL + 128)
    xp = jnp.maximum(xw, 0)
    xn = jnp.minimum(xw, 0)

    # im2col: K lane-shifted windows stored straight into scratch (only one
    # shifted window live at a time; no concatenate temporary).
    for kk in range(k):
        col_ref[kk * c_in_p:(kk + 1) * c_in_p, :] = xp[:, kk:kk + tl]
        col_ref[(k + kk) * c_in_p:(k + kk + 1) * c_in_p, :] = xn[:, kk:kk + tl]

    # Single deep-contraction MXU matmul, f32 accumulation, single bias add.
    acc = jnp.dot(w_ref[...], col_ref[...], preferred_element_type=jnp.float32)
    acc = acc + b_ref[...]
    o_ref[...] = acc.astype(o_ref.dtype)


def _vmem_bytes_per_step(tl, c_in_p, c_out_p, k, itemsize=4):
    """Rough per-step VMEM footprint (double-buffered blocks + scratch + temps)."""
    x_blk = 2 * c_in_p * tl * itemsize                  # main x tile (2 bufs)
    h_blk = 2 * c_in_p * _HALO * itemsize               # halo tile   (2 bufs)
    w_blk = 2 * c_out_p * 2 * k * c_in_p * itemsize     # weight      (2 bufs)
    b_blk = 2 * c_out_p * 128 * itemsize                # bias (lane-padded)
    o_blk = 2 * c_out_p * tl * itemsize                 # output tile (2 bufs)
    col = 2 * k * c_in_p * tl * itemsize                # im2col scratch
    temps = (3 * c_in_p * (tl + _HALO) + 2 * c_out_p * tl) * itemsize
    return x_blk + h_blk + w_blk + b_blk + o_blk + col + temps


def posneg_conv1d(x, weight, bias, ignorebias=False, max_tl=1024,
                  vmem_budget_bytes=24 * 1024 * 1024):
    """Pallas implementation of PosNegConv.forward for an nn.Conv1d (defaults)."""
    n, c_in, length = x.shape
    c_out, c_in_w, k = weight.shape
    assert c_in_w == c_in, "groups != 1 not supported"
    assert k - 1 <= _HALO, "kernel sizes > 129 not supported"
    l_out = length - k + 1
    assert l_out >= 1

    dtype = x.dtype
    c_in_p = _round_up(c_in, 8)
    c_out_p = _round_up(c_out, 8)

    # ---- lane-dense L tiling, sized from a per-step VMEM budget ----
    max_tl = max(128, (max_tl // 128) * 128)             # keep stores unmasked
    tl = min(max_tl, _round_up(l_out, 128))
    while tl > 128 and _vmem_bytes_per_step(tl, c_in_p, c_out_p, k) > vmem_budget_bytes:
        tl -= 128
    n_lt = -(-l_out // tl)
    l_out_p = n_lt * tl
    l_xp = l_out_p + _HALO                               # main tiles + one halo block

    est = _vmem_bytes_per_step(tl, c_in_p, c_out_p, k)
    vmem_limit = int(min(max(int(est * 1.3) + (2 << 20), 24 << 20), 60 << 20))

    # ---- activations: one zero-pad, no per-tile HBM round trip ----
    x_pad = jnp.pad(x, ((0, 0), (0, c_in_p - c_in), (0, l_xp - length))).astype(dtype)

    # ---- weights: clamp, flatten taps (k-major, c-minor), concat pos|neg ----
    wp = jnp.maximum(weight, 0)
    wn = jnp.minimum(weight, 0)

    def _flat(w):
        w = jnp.pad(w, ((0, 0), (0, c_in_p - c_in), (0, 0)))    # (C_out, C_in_p, K)
        return jnp.transpose(w, (0, 2, 1)).reshape(c_out, k * c_in_p)

    w_cat = jnp.concatenate([_flat(wp), _flat(wn)], axis=1)      # (C_out, 2*K*C_in_p)
    w_cat = jnp.pad(w_cat, ((0, c_out_p - c_out), (0, 0))).astype(dtype)

    # ---- bias: clamp(b,min=0) + clamp(b,max=0) == b ----
    if ignorebias or bias is None:
        b_full = jnp.zeros((c_out_p, 1), jnp.float32)
    else:
        b_full = jnp.pad(bias.astype(jnp.float32), (0, c_out_p - c_out)).reshape(c_out_p, 1)

    blk_per_tile = tl // 128

    grid_spec = pltpu.PrefetchScalarGridSpec(
        num_scalar_prefetch=0,
        grid=(n, n_lt),
        in_specs=[
            # main activation tile (batch squeezed)
            pl.BlockSpec((None, c_in_p, tl), lambda b, t: (b, 0, t)),
            # 128-column halo: the block right after the main tile
            pl.BlockSpec((None, c_in_p, _HALO),
                         lambda b, t: (b, 0, (t + 1) * blk_per_tile)),
            # constant weight matrix (index never changes -> fetched once)
            pl.BlockSpec((c_out_p, 2 * k * c_in_p), lambda b, t: (0, 0)),
            # constant bias
            pl.BlockSpec((c_out_p, 1), lambda b, t: (0, 0)),
        ],
        out_specs=pl.BlockSpec((None, c_out_p, tl), lambda b, t: (b, 0, t)),
        scratch_shapes=[pltpu.VMEM((2 * k * c_in_p, tl), dtype)],
    )

    out_p = pl.pallas_call(
        _posneg_conv1d_kernel,
        out_shape=jax.ShapeDtypeStruct((n, c_out_p, l_out_p), dtype),
        grid_spec=grid_spec,
        compiler_params=pltpu.CompilerParams(
            dimension_semantics=("parallel", "parallel"),
            vmem_limit_bytes=vmem_limit),
    )(x_pad, x_pad, w_cat, b_full)

    return out_p[:, :c_out, :l_out]


def _reference_posneg_conv1d(x, weight, bias, ignorebias=False):
    """Pure-JAX reference mirroring the PyTorch forward (for verification)."""
    xp = jnp.maximum(x, 0.0)
    xn = jnp.minimum(x, 0.0)
    wp = jnp.maximum(weight, 0.0)
    wn = jnp.minimum(weight, 0.0)
    dn = ("NCH", "OIH", "NCH")
    vp = jax.lax.conv_general_dilated(xp, wp, (1,), "VALID", dimension_numbers=dn)
    vn = jax.lax.conv_general_dilated(xn, wn, (1,), "VALID", dimension_numbers=dn)
    if not ignorebias and bias is not None:
        vp = vp + jnp.maximum(bias, 0.0)[None, :, None]
        vn = vn + jnp.minimum(bias, 0.0)[None, :, None]
    return vp + vn


if __name__ == "__main__":
    key = jax.random.PRNGKey(0)
    kx, kw, kb = jax.random.split(key, 3)

    # Test 1: bias path, single L tile.
    N, C_IN, L = 2, 4, 16
    C_OUT, K = 8, 3
    x = jax.random.normal(kx, (N, C_IN, L), dtype=jnp.float32)
    bound = 1.0 / jnp.sqrt(jnp.float32(C_IN * K))       # PyTorch-style init bound
    weight = jax.random.uniform(kw, (C_OUT, C_IN, K), jnp.float32, -bound, bound)
    bias = jax.random.uniform(kb, (C_OUT,), jnp.float32, -bound, bound)

    out = jax.block_until_ready(posneg_conv1d(x, weight, bias, ignorebias=False))
    ref = _reference_posneg_conv1d(x, weight, bias, ignorebias=False)
    assert out.shape == (N, C_OUT, L - K + 1)
    assert jnp.allclose(out, ref, atol=1e-5, rtol=1e-5), "mismatch vs reference (bias)"

    # Test 2: ignorebias path.
    out_nb = jax.block_until_ready(posneg_conv1d(x, weight, bias, ignorebias=True))
    ref_nb = _reference_posneg_conv1d(x, weight, bias, ignorebias=True)
    assert jnp.allclose(out_nb, ref_nb, atol=1e-5, rtol=1e-5), "mismatch vs reference (no bias)"

    # Test 3: multi-tile path (max_tl=128 forces n_lt>1, exercising the halo).
    k2x, k2w, k2b = jax.random.split(jax.random.PRNGKey(1), 3)
    N2, C2_IN, L2, C2_OUT, K2 = 1, 3, 300, 5, 5
    x2 = jax.random.normal(k2x, (N2, C2_IN, L2), dtype=jnp.float32)
    w2 = jax.random.normal(k2w, (C2_OUT, C2_IN, K2), dtype=jnp.float32) * 0.1
    b2 = jax.random.normal(k2b, (C2_OUT,), dtype=jnp.float32) * 0.1
    out2 = jax.block_until_ready(posneg_conv1d(x2, w2, b2, ignorebias=False, max_tl=128))
    ref2 = _reference_posneg_conv1d(x2, w2, b2, ignorebias=False)
    assert out2.shape == (N2, C2_OUT, L2 - K2 + 1)
    assert jnp.allclose(out2, ref2, atol=1e-4, rtol=1e-4), "mismatch vs reference (multi-tile)"

    print("KERNEL_OK")
</pallas_src>

<mosaic_0001>
module attributes {stable_mosaic.version = 11 : i64} {
  func.func @_posneg_conv1d_kernel(%arg0: i32, %arg1: i32, %arg2: memref<1x8x128xf32, #tpu.memory_space<vmem>>, %arg3: memref<1x8x128xf32, #tpu.memory_space<vmem>>, %arg4: memref<8x48xf32, #tpu.memory_space<vmem>>, %arg5: memref<8x1xf32, #tpu.memory_space<vmem>>, %arg6: memref<1x8x128xf32, #tpu.memory_space<vmem>>, %arg7: memref<48x128xf32, #tpu.memory_space<vmem>>) attributes {dimension_semantics = [#tpu.dimension_semantics<parallel>, #tpu.dimension_semantics<parallel>], iteration_bounds = array<i64: 2, 1>, scalar_prefetch = 0 : i64, scratch_operands = 1 : i64, tpu.core_type = #tpu.core_type<tc>, window_params = [{transform_indices = @transform_0, window_bounds = array<i64: 1, 8, 128>}, {transform_indices = @transform_1, window_bounds = array<i64: 1, 8, 128>}, {pipeline_mode = #tpu.pipeline_mode<synchronous>, transform_indices = @transform_2, window_bounds = array<i64: 8, 48>}, {pipeline_mode = #tpu.pipeline_mode<synchronous>, transform_indices = @transform_3, window_bounds = array<i64: 8, 1>}, {transform_indices = @transform_4, window_bounds = array<i64: 1, 8, 128>}]} {
    %c0 = arith.constant 0 : index
    %c0_0 = arith.constant 0 : index
    %c0_1 = arith.constant 0 : index
    %0 = vector.load %arg2[%c0, %c0_0, %c0_1] : memref<1x8x128xf32, #tpu.memory_space<vmem>>, vector<1x8x128xf32>
    %1 = vector.shape_cast %0 : vector<1x8x128xf32> to vector<8x128xf32>
    %c0_2 = arith.constant 0 : index
    %c0_3 = arith.constant 0 : index
    %c0_4 = arith.constant 0 : index
    %2 = vector.load %arg3[%c0_2, %c0_3, %c0_4] : memref<1x8x128xf32, #tpu.memory_space<vmem>>, vector<1x8x128xf32>
    %3 = vector.shape_cast %2 : vector<1x8x128xf32> to vector<8x128xf32>
    %4 = tpu.concatenate %1, %3 in 1 : vector<8x128xf32>, vector<8x128xf32> -> vector<8x256xf32>
    %cst = arith.constant 0.000000e+00 : f32
    %5 = vector.broadcast %cst : f32 to vector<8x256xf32>
    %6 = arith.maximumf %4, %5 : vector<8x256xf32>
    %cst_5 = arith.constant 0.000000e+00 : f32
    %7 = vector.broadcast %cst_5 : f32 to vector<8x256xf32>
    %8 = arith.minimumf %4, %7 : vector<8x256xf32>
    %9 = vector.extract_strided_slice %6 {offsets = [0, 0], sizes = [8, 128], strides = [1, 1]} : vector<8x256xf32> to vector<8x128xf32>
    %c0_6 = arith.constant 0 : index
    %c0_7 = arith.constant 0 : index
    %10 = vector.load %arg7[%c0_6, %c0_7] : memref<48x128xf32, #tpu.memory_space<vmem>>, vector<8x128xf32>
    tpu.vector_store %arg7[%c0_6, %c0_7], %9 {strides = array<i32>} : memref<48x128xf32, #tpu.memory_space<vmem>>, vector<8x128xf32>,
    %11 = vector.extract_strided_slice %8 {offsets = [0, 0], sizes = [8, 128], strides = [1, 1]} : vector<8x256xf32> to vector<8x128xf32>
    %c24 = arith.constant 24 : index
    %c0_8 = arith.constant 0 : index
    %12 = vector.load %arg7[%c24, %c0_8] : memref<48x128xf32, #tpu.memory_space<vmem>>, vector<8x128xf32>
    tpu.vector_store %arg7[%c24, %c0_8], %11 {strides = array<i32>} : memref<48x128xf32, #tpu.memory_space<vmem>>, vector<8x128xf32>,
    %13 = vector.extract_strided_slice %6 {offsets = [0, 1], sizes = [8, 128], strides = [1, 1]} : vector<8x256xf32> to vector<8x128xf32>
    %c8 = arith.constant 8 : index
    %c0_9 = arith.constant 0 : index
    %14 = vector.load %arg7[%c8, %c0_9] : memref<48x128xf32, #tpu.memory_space<vmem>>, vector<8x128xf32>
    tpu.vector_store %arg7[%c8, %c0_9], %13 {strides = array<i32>} : memref<48x128xf32, #tpu.memory_space<vmem>>, vector<8x128xf32>,
    %15 = vector.extract_strided_slice %8 {offsets = [0, 1], sizes = [8, 128], strides = [1, 1]} : vector<8x256xf32> to vector<8x128xf32>
    %c32 = arith.constant 32 : index
    %c0_10 = arith.constant 0 : index
    %16 = vector.load %arg7[%c32, %c0_10] : memref<48x128xf32, #tpu.memory_space<vmem>>, vector<8x128xf32>
    tpu.vector_store %arg7[%c32, %c0_10], %15 {strides = array<i32>} : memref<48x128xf32, #tpu.memory_space<vmem>>, vector<8x128xf32>,
    %17 = vector.extract_strided_slice %6 {offsets = [0, 2], sizes = [8, 128], strides = [1, 1]} : vector<8x256xf32> to vector<8x128xf32>
    %c16 = arith.constant 16 : index
    %c0_11 = arith.constant 0 : index
    %18 = vector.load %arg7[%c16, %c0_11] : memref<48x128xf32, #tpu.memory_space<vmem>>, vector<8x128xf32>
    tpu.vector_store %arg7[%c16, %c0_11], %17 {strides = array<i32>} : memref<48x128xf32, #tpu.memory_space<vmem>>, vector<8x128xf32>,
    %19 = vector.extract_strided_slice %8 {offsets = [0, 2], sizes = [8, 128], strides = [1, 1]} : vector<8x256xf32> to vector<8x128xf32>
    %c40 = arith.constant 40 : index
    %c0_12 = arith.constant 0 : index
    %20 = vector.load %arg7[%c40, %c0_12] : memref<48x128xf32, #tpu.memory_space<vmem>>, vector<8x128xf32>
    tpu.vector_store %arg7[%c40, %c0_12], %19 {strides = array<i32>} : memref<48x128xf32, #tpu.memory_space<vmem>>, vector<8x128xf32>,
    %c0_13 = arith.constant 0 : index
    %c0_14 = arith.constant 0 : index
    %21 = vector.load %arg4[%c0_13, %c0_14] : memref<8x48xf32, #tpu.memory_space<vmem>>, vector<8x48xf32>
    %c0_15 = arith.constant 0 : index
    %c0_16 = arith.constant 0 : index
    %22 = vector.load %arg7[%c0_15, %c0_16] : memref<48x128xf32, #tpu.memory_space<vmem>>, vector<48x128xf32>
    %cst_17 = arith.constant dense<0.000000e+00> : vector<8x128xf32>
    %23 = tpu.matmul %21, %22, %cst_17 {dimension_numbers = #tpu.dot_dimension_numbers<[1], [0], [0], [1], [0, 0, 1, 1], [], []>} : vector<8x48xf32>, vector<48x128xf32>, vector<8x128xf32> -> vector<8x128xf32>
    %c0_18 = arith.constant 0 : index
    %c0_19 = arith.constant 0 : index
    %24 = vector.load %arg5[%c0_18, %c0_19] : memref<8x1xf32, #tpu.memory_space<vmem>>, vector<8x1xf32>
    %25 = vector.broadcast %24 : vector<8x1xf32> to vector<8x128xf32>
    %26 = arith.addf %23, %25 : vector<8x128xf32>
    %c0_20 = arith.constant 0 : index
    %c0_21 = arith.constant 0 : index
    %c0_22 = arith.constant 0 : index
    %27 = vector.load %arg6[%c0_20, %c0_21, %c0_22] : memref<1x8x128xf32, #tpu.memory_space<vmem>>, vector<1x8x128xf32>
    %28 = vector.shape_cast %27 : vector<1x8x128xf32> to vector<8x128xf32>
    %29 = vector.shape_cast %26 : vector<8x128xf32> to vector<1x8x128xf32>
    tpu.vector_store %arg6[%c0_20, %c0_21, %c0_22], %29 {strides = array<i32>} : memref<1x8x128xf32, #tpu.memory_space<vmem>>, vector<1x8x128xf32>,
    return
  }
  func.func @transform_0(%arg0: i32, %arg1: i32) -> (i32, i32, i32) {
    %c0_i32 = arith.constant 0 : i32
    %c0_i32_0 = arith.constant 0 : i32
    return %arg0, %c0_i32, %arg1 : i32, i32, i32
  }
  func.func @transform_1(%arg0: i32, %arg1: i32) -> (i32, i32, i32) {
    %c1_i32 = arith.constant 1 : i32
    %0 = arith.addi %arg1, %c1_i32 : i32
    %c1_i32_0 = arith.constant 1 : i32
    %1 = arith.muli %0, %c1_i32_0 : i32
    %c0_i32 = arith.constant 0 : i32
    %c0_i32_1 = arith.constant 0 : i32
    return %arg0, %c0_i32, %1 : i32, i32, i32
  }
  func.func @transform_2(%arg0: i32, %arg1: i32) -> (i32, i32) {
    %c0_i32 = arith.constant 0 : i32
    %c0_i32_0 = arith.constant 0 : i32
    %c0_i32_1 = arith.constant 0 : i32
    return %c0_i32, %c0_i32_0 : i32, i32
  }
  func.func @transform_3(%arg0: i32, %arg1: i32) -> (i32, i32) {
    %c0_i32 = arith.constant 0 : i32
    %c0_i32_0 = arith.constant 0 : i32
    %c0_i32_1 = arith.constant 0 : i32
    return %c0_i32, %c0_i32_0 : i32, i32
  }
  func.func @transform_4(%arg0: i32, %arg1: i32) -> (i32, i32, i32) {
    %c0_i32 = arith.constant 0 : i32
    %c0_i32_0 = arith.constant 0 : i32
    return %arg0, %c0_i32, %arg1 : i32, i32, i32
  }
}

</mosaic_0001>

<llo_original>
// kernel: tpu_custom_call.1
$region0: #{tpu_custom_call.1}
  #allocation0 [shape = 'u32[]', space=smem, size = 0x4, offset = 0x4, fixed_abs, tag = 'smem constant byte address 0x4 - core index']
  #allocation1 [shape = 'u32[144,128]{1,0:T(1,128)}', space=vmem, size = 0x12000, scoped, tag = 'internal scratch']
  #allocation2 [shape = 'f32[48,128]{1,0:T(8,128)}', space=vmem, size = 0x6000, scoped, tag = 'scratch operand']
  %s0 = inlined_call_operand.hbm [shape: f32[2,8,256], index: 0, kind: input, shape index: {}]
  %s1 = inlined_call_operand.hbm [shape: f32[2,8,256], index: 1, kind: input, shape index: {}]
  %s2 = inlined_call_operand.vmem [shape: f32[8,48], index: 2, kind: input, shape index: {}]
  %s3 = inlined_call_operand.vmem [shape: f32[8,1], index: 3, kind: input, shape index: {}]
  %s4 = inlined_call_operand.hbm [shape: f32[2,8,128], index: 4, kind: output, shape index: {}]
  %s5 = sld [smem:[#allocation0]]
  $region57: #{tpu_custom_call.1} parent=0
    _
  %s7 = ssub.s32 1, %s5
  %s8 = scalar_select 0, %s7, %s5
  $region1: #{tpu_custom_call.1} parent=0
    #allocation3 [shape = 'u8[8192]{0}', space=vmem, size = 0x2000, scoped, tag = 'input window, operand 0']
    #allocation4 [shape = 's32[2]{0}', space=sflag, size = 0x8, scoped, tag = 'scoped memory for tpu_custom_call.1']
    #allocation5 [shape = 's32[2]{0}', space=sflag, size = 0x8, scoped, tag = 'scoped memory for tpu_custom_call.1']
    #allocation6 [shape = 'u8[8192]{0}', space=vmem, size = 0x2000, scoped, tag = 'input window, operand 1']
    #allocation7 [shape = 's32[2]{0}', space=sflag, size = 0x8, scoped, tag = 'scoped memory for tpu_custom_call.1']
    #allocation8 [shape = 'u8[8192]{0}', space=vmem, size = 0x2000, scoped, tag = 'output window, operand 0']
    %9 = vsyncpa [#allocation4], 0
    %s10 = scalar_lea.sflag [#allocation4], 1
    %11 = vsyncpa %s10, 0
    %12 = vsyncpa [#allocation7], 0
    %s13 = scalar_lea.sflag [#allocation7], 1
    %14 = vsyncpa %s13, 0
    %15 = vsyncpa [#allocation5], 0
    %s16 = scalar_lea.sflag [#allocation5], 1
    %17 = vsyncpa %s16, 0
    loop: start=0, step=1, limit=4
    $region2: #{tpu_custom_call.1} parent=1 // loop_pre_header
      _
    $region3: #{tpu_custom_call.1} parent=1 // loop_header
      %s19 = sphi 0, %s23
      %p20 = scmp.ge.s32.totalorder %s19, 4
      %s26 = sphi 0, %s38
      %s27 = sphi 0, %s34
      %s28 = sphi 0, %s26
      %s29 = sphi 0, %s27
      %s30 = sphi 0, %s28
      %s31 = sphi 0, %s29
      %s43 = sphi 0, %s45
      %s46 = sphi 0, %s43
      %s47 = sphi 0, %s46
      %s63 = sphi 0, %s47
      %s73 = sphi 0, %s75
      %s76 = sphi 0, %s73
      %s77 = sphi 0, %s76
      %s93 = sphi 0, %s77
      %s97 = sphi 0, %s97
      %s99 = sphi 0, %s97
      %s100 = sphi 0, %s99
      %s114 = sphi 0, %s100
      %s118 = sphi 0, %s118
      %s120 = sphi 0, %s118
      %s121 = sphi 0, %s120
      %s135 = sphi 0, %s121
      %s143 = sphi 0, %s145
      %s146 = sphi 0, %s143
      %s147 = sphi 0, %s146
      %s163 = sphi 0, %s147
    $region4: #{tpu_custom_call.1} parent=1 // loop_header_branch
      %22 = sbr.rel (%p20) target = $region8
    $region5: #{tpu_custom_call.1} parent=1 // loop_body
      %s24 = ssub.s32 %s19, 1
      %s25 = ssub.s32 %s19, 2
      %s32 = sadd.s32 1, %s27
      %p33 = scmp.ge.s32.totalorder %s32, 1
      %s34 = scalar_select %p33, 0, %s32
      %s35 = sadd.s32 1, %s26
      %s36 = scalar_select %p33, %s35, %s26
      %p37 = scmp.ge.s32.totalorder %s36, 2
      %s38 = scalar_select %p37, 0, %s36
      %s39 = ssub.s32 %s26, %s38
      %s40 = ssub.s32 %s27, %s34
      %s41 = sor.u32 %s39, %s40
      %p42 = scmp.eq.s32.totalorder %s41, 0
      %s44 = sadd.s32 %s43, 1
      %s45 = scalar_select %p42, %s43, %s44
      %p48 = pneg %p42
      %p49 = scmp.eq.s32.totalorder %s19, 1
      %p50 = por %p48, %p49
      %p51 = scmp.ne.s32.totalorder %s43, %s46
      %p52 = scmp.eq.s32.totalorder %s19, 0
      %p53 = por %p51, %p52
      %p54 = scmp.ne.s32.totalorder %s43, %s46
      %p55 = scmp.eq.s32.totalorder %s24, 1
      %p56 = por %p54, %p55
      %p57 = scmp.ne.s32.totalorder %s46, %s47
      %p58 = scmp.eq.s32.totalorder %s24, 0
      %p59 = por %p57, %p58
      %p60 = scmp.ne.s32.totalorder %s46, %s47
      %p61 = scmp.eq.s32.totalorder %s25, 1
      %p62 = por %p60, %p61
      %p64 = scmp.ne.s32.totalorder %s47, %s63
      %p65 = scmp.eq.s32.totalorder %s25, 0
      %p66 = por %p64, %p65
      %s67 = sadd.s32 %s27, 1
      %s68 = sadd.s32 %s34, 1
      %s69 = ssub.s32 %s26, %s38
      %s70 = ssub.s32 %s67, %s68
      %s71 = sor.u32 %s69, %s70
      %p72 = scmp.eq.s32.totalorder %s71, 0
      %s74 = sadd.s32 %s73, 1
      %s75 = scalar_select %p72, %s73, %s74
      %p78 = pneg %p72
      %p79 = scmp.eq.s32.totalorder %s19, 1
      %p80 = por %p78, %p79
      %p81 = scmp.ne.s32.totalorder %s73, %s76
      %p82 = scmp.eq.s32.totalorder %s19, 0
      %p83 = por %p81, %p82
      %p84 = scmp.ne.s32.totalorder %s73, %s76
      %p85 = scmp.eq.s32.totalorder %s24, 1
      %p86 = por %p84, %p85
      %p87 = scmp.ne.s32.totalorder %s76, %s77
      %p88 = scmp.eq.s32.totalorder %s24, 0
      %p89 = por %p87, %p88
      %p90 = scmp.ne.s32.totalorder %s76, %s77
      %p91 = scmp.eq.s32.totalorder %s25, 1
      %p92 = por %p90, %p91
      %p94 = scmp.ne.s32.totalorder %s77, %s93
      %p95 = scmp.eq.s32.totalorder %s25, 0
      %p96 = por %p94, %p95
      %s98 = sadd.s32 %s97, 1
      %p101 = scmp.eq.s32.totalorder %s19, 1
      %p102 = scmp.ne.s32.totalorder %s97, %s99
      %p103 = scmp.eq.s32.totalorder %s19, 0
      %p104 = por %p102, %p103
      %p105 = scmp.ne.s32.totalorder %s97, %s99
      %p106 = scmp.eq.s32.totalorder %s24, 1
      %p107 = por %p105, %p106
      %p108 = scmp.ne.s32.totalorder %s99, %s100
      %p109 = scmp.eq.s32.totalorder %s24, 0
      %p110 = por %p108, %p109
      %p111 = scmp.ne.s32.totalorder %s99, %s100
      %p112 = scmp.eq.s32.totalorder %s25, 1
      %p113 = por %p111, %p112
      %p115 = scmp.ne.s32.totalorder %s100, %s114
      %p116 = scmp.eq.s32.totalorder %s25, 0
      %p117 = por %p115, %p116
      %s119 = sadd.s32 %s118, 1
      %p122 = scmp.eq.s32.totalorder %s19, 1
      %p123 = scmp.ne.s32.totalorder %s118, %s120
      %p124 = scmp.eq.s32.totalorder %s19, 0
      %p125 = por %p123, %p124
      %p126 = scmp.ne.s32.totalorder %s118, %s120
      %p127 = scmp.eq.s32.totalorder %s24, 1
      %p128 = por %p126, %p127
      %p129 = scmp.ne.s32.totalorder %s120, %s121
      %p130 = scmp.eq.s32.totalorder %s24, 0
      %p131 = por %p129, %p130
      %p132 = scmp.ne.s32.totalorder %s120, %s121
      %p133 = scmp.eq.s32.totalorder %s25, 1
      %p134 = por %p132, %p133
      %p136 = scmp.ne.s32.totalorder %s121, %s135
      %p137 = scmp.eq.s32.totalorder %s25, 0
      %p138 = por %p136, %p137
      %s139 = ssub.s32 %s26, %s38
      %s140 = ssub.s32 %s27, %s34
      %s141 = sor.u32 %s139, %s140
      %p142 = scmp.eq.s32.totalorder %s141, 0
      %s144 = sadd.s32 %s143, 1
      %s145 = scalar_select %p142, %s143, %s144
      %p148 = pneg %p142
      %p149 = scmp.eq.s32.totalorder %s19, 1
      %p150 = por %p148, %p149
      %p151 = scmp.ne.s32.totalorder %s143, %s146
      %p152 = scmp.eq.s32.totalorder %s19, 0
      %p153 = por %p151, %p152
      %p154 = scmp.ne.s32.totalorder %s143, %s146
      %p155 = scmp.eq.s32.totalorder %s24, 1
      %p156 = por %p154, %p155
      %p157 = scmp.ne.s32.totalorder %s146, %s147
      %p158 = scmp.eq.s32.totalorder %s24, 0
      %p159 = por %p157, %p158
      %p160 = scmp.ne.s32.totalorder %s146, %s147
      %p161 = scmp.eq.s32.totalorder %s25, 1
      %p162 = por %p160, %p161
      %p164 = scmp.ne.s32.totalorder %s147, %s163
      %p165 = scmp.eq.s32.totalorder %s25, 0
      %p166 = por %p164, %p165
      %p167 = scmp.le.s32.totalorder 1, %s19
      %p168 = scmp.lt.s32.totalorder %s19, 3
      %p169 = pnand %p167, %p168
      %p170 = pneg %p169
      // Predicated region
      $region9: #{tpu_custom_call.1} parent=5 // pred_check
        _
      $region10: #{tpu_custom_call.1} parent=5 // pred_check_branch
        %172 = sbr.rel (%p169) target = $region12
      $region11: #{tpu_custom_call.1} parent=5 // pred_region
        %s173 = ssub.s32 %s19, 1
        // Predicated region
        $region13: #{tpu_custom_call.1} parent=11 // pred_check
          %p174 = pneg %p110
        $region14: #{tpu_custom_call.1} parent=11 // pred_check_branch
          %176 = sbr.rel (%p174) target = $region16
        $region15: #{tpu_custom_call.1} parent=11 // pred_region
          _
        $region16: #{tpu_custom_call.1} parent=11 // pred_fallthru
          _
        // Predicated region
        $region17: #{tpu_custom_call.1} parent=11 // pred_check
          %p177 = pneg %p131
        $region18: #{tpu_custom_call.1} parent=11 // pred_check_branch
          %179 = sbr.rel (%p177) target = $region20
        $region19: #{tpu_custom_call.1} parent=11 // pred_region
          _
        $region20: #{tpu_custom_call.1} parent=11 // pred_fallthru
          _
      $region12: #{tpu_custom_call.1} parent=5 // pred_fallthru
        _
      %p180 = scmp.lt.s32.totalorder %s19, 2
      // Predicated region
      $region21: #{tpu_custom_call.1} parent=5 // pred_check
        %p181 = pneg %p180
      $region22: #{tpu_custom_call.1} parent=5 // pred_check_branch
        %183 = sbr.rel (%p181) target = $region24
      $region23: #{tpu_custom_call.1} parent=5 // pred_region
        // Predicated region
        $region25: #{tpu_custom_call.1} parent=23 // pred_check
          %p184 = pneg %p53
        $region26: #{tpu_custom_call.1} parent=23 // pred_check_branch
          %186 = sbr.rel (%p184) target = $region28
        $region27: #{tpu_custom_call.1} parent=23 // pred_region
          %s187 = sand.u32 %s43, 1
          %s188 = scalar_lea.sflag [#allocation4], %s187
          %s189 = sand.u32 %s43, 1
          %s190 = smul.addr %s189, 8
          %s191 = scalar_lea.vmem [#allocation3], %s190
          %s193 = ssub.s32 128, 128
          %194 = vsyncadd %s188, %s193
          %s195 = smul.addr %s26, 2
          %s196 = sadd.s32 %s27, %s195
          %s197 = smul.addr %s196, 128
          %s198 = scalar_lea.hbm %s0, %s197
          %s200 = sshll.u32 %s191, 4
          %s201 = int_to_ptr.vmem [resolvable:$true] %s200
          %203 = dma.hbm_to_vmem [thread:$0]  %s198, 128, %s201, %s188
        $region28: #{tpu_custom_call.1} parent=23 // pred_fallthru
          _
        // Predicated region
        $region29: #{tpu_custom_call.1} parent=23 // pred_check
          %p204 = pneg %p83
        $region30: #{tpu_custom_call.1} parent=23 // pred_check_branch
          %206 = sbr.rel (%p204) target = $region32
        $region31: #{tpu_custom_call.1} parent=23 // pred_region
          %s207 = sand.u32 %s73, 1
          %s208 = scalar_lea.sflag [#allocation7], %s207
          %s209 = sand.u32 %s73, 1
          %s210 = smul.addr %s209, 8
          %s211 = scalar_lea.vmem [#allocation6], %s210
          %s212 = sadd.s32 %s27, 1
          %s214 = ssub.s32 128, 128
          %215 = vsyncadd %s208, %s214
          %s216 = smul.addr %s26, 2
          %s217 = sadd.s32 %s212, %s216
          %s218 = smul.addr %s217, 128
          %s219 = scalar_lea.hbm %s1, %s218
          %s221 = sshll.u32 %s211, 4
          %s222 = int_to_ptr.vmem [resolvable:$true] %s221
          %224 = dma.hbm_to_vmem [thread:$0]  %s219, 128, %s222, %s208
        $region32: #{tpu_custom_call.1} parent=23 // pred_fallthru
          _
      $region24: #{tpu_custom_call.1} parent=5 // pred_fallthru
        _
      %p225 = scmp.le.s32.totalorder 1, %s19
      %p226 = scmp.lt.s32.totalorder %s19, 3
      %p227 = pnand %p225, %p226
      %p228 = pneg %p227
      // Predicated region
      $region33: #{tpu_custom_call.1} parent=5 // pred_check
        _
      $region34: #{tpu_custom_call.1} parent=5 // pred_check_branch
        %230 = sbr.rel (%p227) target = $region36
      $region35: #{tpu_custom_call.1} parent=5 // pred_region
        %s231 = ssub.s32 %s19, 1
        %s232 = sand.u32 %s46, 1
        %s233 = scalar_lea.sflag [#allocation4], %s232
        %s234 = sand.u32 %s46, 1
        %s235 = smul.addr %s234, 8
        %s236 = scalar_lea.vmem [#allocation3], %s235
        // Predicated region
        $region37: #{tpu_custom_call.1} parent=35 // pred_check
          %p237 = pneg %p59
        $region38: #{tpu_custom_call.1} parent=35 // pred_check_branch
          %239 = sbr.rel (%p237) target = $region40
        $region39: #{tpu_custom_call.1} parent=35 // pred_region
          %240 = dma.done %s233, 128
        $region40: #{tpu_custom_call.1} parent=35 // pred_fallthru
          _
        %s241 = sand.u32 %s76, 1
        %s242 = scalar_lea.sflag [#allocation7], %s241
        %s243 = sand.u32 %s76, 1
        %s244 = smul.addr %s243, 8
        %s245 = scalar_lea.vmem [#allocation6], %s244
        // Predicated region
        $region41: #{tpu_custom_call.1} parent=35 // pred_check
          %p246 = pneg %p89
        $region42: #{tpu_custom_call.1} parent=35 // pred_check_branch
          %248 = sbr.rel (%p246) target = $region44
        $region43: #{tpu_custom_call.1} parent=35 // pred_region
          %249 = dma.done %s242, 128
        $region44: #{tpu_custom_call.1} parent=35 // pred_fallthru
          _
        %s250 = sand.u32 %s46, 1
        %s251 = scalar_lea.sflag [#allocation4], %s250
        %s252 = sand.u32 %s46, 1
        %s253 = smul.addr %s252, 8
        %s254 = scalar_lea.vmem [#allocation3], %s253
        %p255 = pneg %p59
        %p256 = pneg %p56
        %s257 = sand.u32 %s76, 1
        %s258 = scalar_lea.sflag [#allocation7], %s257
        %s259 = sand.u32 %s76, 1
        %s260 = smul.addr %s259, 8
        %s261 = scalar_lea.vmem [#allocation6], %s260
        %p262 = pneg %p89
        %p263 = pneg %p86
        %p264 = pneg %p110
        %p265 = pneg %p107
        %p266 = pneg %p131
        %p267 = pneg %p128
        %p268 = pneg %p159
        %p269 = pneg %p156
        %s270 = sand.u32 %s146, 1
        %s271 = scalar_lea.sflag [#allocation5], %s270
        %s272 = sand.u32 %s146, 1
        %s273 = smul.addr %s272, 8
        %s274 = scalar_lea.vmem [#allocation8], %s273
        %s275 = sadd.s32 %s29, 1
        %v276 = vld [vmem:[%s236] sm:$0xff]
        %v277 = vld [vmem:[%s245] sm:$0xff]
        %v278 = vmax.f32 %v276, 0.0
        %v279 = vmax.f32 %v277, 0.0
        %v280 = vmin.f32 %v276, 0.0
        %v281 = vmin.f32 %v277, 0.0
        %282 = vst [vmem:[#allocation2] sm:$0xff] %v278
        %283 = vst [vmem:[#allocation2 + $0x18] sm:$0xff] %v280
        %286 = vrot.lane.b32.xlu0 %v278, 127
        %v287 = vpop.permute.xlu0 %286
        %288 = vrot.lane.b32.xlu0 %v279, 127
        %v289 = vpop.permute.xlu0 %288
        %vm290 = vcmask 1039360
        %v291 = vsel %vm290, %v287, %v289
        %293 = vst [vmem:[#allocation2 + $0x8] sm:$0xff] %v291
        %296 = vrot.lane.b32.xlu0 %v280, 127
        %v297 = vpop.permute.xlu0 %296
        %298 = vrot.lane.b32.xlu0 %v281, 127
        %v299 = vpop.permute.xlu0 %298
        %v300 = vsel %vm290, %v297, %v299
        %302 = vst [vmem:[#allocation2 + $0x20] sm:$0xff] %v300
        %303 = vrot.lane.b32.xlu0 %v278, 126
        %v304 = vpop.permute.xlu0 %303
        %305 = vrot.lane.b32.xlu0 %v279, 126
        %v306 = vpop.permute.xlu0 %305
        %vm307 = vcmask 1031168
        %v308 = vsel %vm307, %v304, %v306
        %310 = vst [vmem:[#allocation2 + $0x10] sm:$0xff] %v308
        %311 = vrot.lane.b32.xlu0 %v280, 126
        %v312 = vpop.permute.xlu0 %311
        %313 = vrot.lane.b32.xlu0 %v281, 126
        %v314 = vpop.permute.xlu0 %313
        %v315 = vsel %vm307, %v312, %v314
        %317 = vst [vmem:[#allocation2 + $0x28] sm:$0xff] %v315
        %v318 = vld [vmem:[%s2] sm:$0xff]
        %v319 = vld [vmem:[#allocation2] sm:$0xff]
        %v320 = vld [vmem:[#allocation2 + $0x8] sm:$0xff]
        %v321 = vld [vmem:[#allocation2 + $0x10] sm:$0xff]
        %v322 = vld [vmem:[#allocation2 + $0x18] sm:$0xff]
        %v323 = vld [vmem:[#allocation2 + $0x20] sm:$0xff]
        %v324 = vld [vmem:[#allocation2 + $0x28] sm:$0xff]
        %v325 = vld [vmem:[%s3] sm:$0xff]
        %327 = vset.pattern.permute.xlu0 0
        %328 = vperm.xlu0 %327, %v325
        %v329 = vpop.permute.xlu0 %328
        %vm331 = vcmask 392192
        %v333 = vsel %vm331, %v318, 0
        %335 = vmatprep.subr.mxu0 0.0
        %336 = vmatpush1.msra.mxu0 %v319
        %337 = vmatprep.subr.mxu0 0.0
        %338 = vmatpush1.msra.mxu0 %v320
        %339 = vmatprep.subr.mxu0 0.0
        %340 = vmatpush1.msra.mxu0 %v321
        %341 = vmatprep.subr.mxu0 0.0
        %342 = vmatpush1.msra.mxu0 %v322
        %343 = vmatprep.subr.mxu0 0.0
        %344 = vmatpush1.msra.mxu0 %v323
        %345 = vmatprep.subr.mxu0 0.0
        %346 = vmatpush1.msra.mxu0 %v324
        %347 = vmatprep.subr.mxu0 0.0
        %348 = vmatpush1.msra.mxu0 0.0
        %349 = vmatprep.subr.mxu0 0.0
        %350 = vmatpush1.msra.mxu0 0.0
        %351 = vmatprep.subr.mxu0 0.0
        %352 = vmatpush1.msra.mxu0 0.0
        %353 = vmatprep.subr.mxu0 0.0
        %354 = vmatpush1.msra.mxu0 0.0
        %355 = vmatprep.subr.mxu0 0.0
        %356 = vmatpush1.msra.mxu0 0.0
        %357 = vmatprep.subr.mxu0 0.0
        %358 = vmatpush1.msra.mxu0 0.0
        %359 = vmatprep.subr.mxu0 0.0
        %360 = vmatpush1.msra.mxu0 0.0
        %361 = vmatprep.subr.mxu0 0.0
        %362 = vmatpush1.msra.mxu0 0.0
        %363 = vmatprep.subr.mxu0 0.0
        %364 = vmatpush1.msra.mxu0 0.0
        %365 = vmatprep.subr.mxu0 0.0
        %366 = vmatpush1.msra.mxu0 0.0
        %367 = vmatprep.subr.mxu0 0.0
        %368 = vmatpush1.msra.mxu0 0.0
        %369 = vmatprep.subr.mxu0 0.0
        %370 = vmatpush1.msra.mxu0 0.0
        %371 = vmatprep.subr.mxu0 0.0
        %372 = vmatpush1.msra.mxu0 0.0
        %373 = vmatprep.subr.mxu0 0.0
        %374 = vmatpush1.msra.mxu0 0.0
        %375 = vmatprep.subr.mxu0 0.0
        %376 = vmatpush1.msra.mxu0 0.0
        %377 = vmatprep.subr.mxu0 0.0
        %378 = vmatpush1.msra.mxu0 0.0
        %379 = vmatprep.subr.mxu0 0.0
        %380 = vmatpush1.msra.mxu0 0.0
        %381 = vmatprep.subr.mxu0 0.0
        %382 = vmatpush1.msra.mxu0 0.0
        %383 = vmatprep.subr.mxu0 0.0
        %384 = vmatpush1.msra.mxu0 0.0
        %385 = vmatprep.subr.mxu0 0.0
        %386 = vmatpush1.msra.mxu0 0.0
        %387 = vmatprep.subr.mxu0 0.0
        %388 = vmatpush1.msra.mxu0 0.0
        %389 = vmatprep.subr.mxu0 0.0
        %390 = vmatpush1.msra.mxu0 0.0
        %391 = vmatprep.subr.mxu0 0.0
        %392 = vmatpush1.msra.mxu0 0.0
        %393 = vmatprep.subr.mxu0 0.0
        %394 = vmatpush1.msra.mxu0 0.0
        %395 = vmatprep.subr.mxu0 0.0
        %396 = vmatpush1.msra.mxu0 0.0
        %397 = vmatprep.subr.mxu0 0.0
        %398 = vmatpush1.msra.mxu0 0.0
        %399 = vmatprep.mubr.f32.mxu0 0.0
        %400 = vmatmul.mubr.f32.gmra.mrb[0].mxu0 %v333
        %v401 = vpop.f32.mrb[0].mxu0
        %v402 = vadd.f32 %v329, %v401
        %v403 = vpop.f32.mrb[0].mxu0
        %404 = vdwg.mxu0
        %405 = vst [vmem:[%s274] sm:$0xff] %v402
        %s406 = sand.u32 %s146, 1
        %s407 = scalar_lea.sflag [#allocation5], %s406
        %s408 = sand.u32 %s146, 1
        %s409 = smul.addr %s408, 8
        %s410 = scalar_lea.vmem [#allocation8], %s409
        // Predicated region
        $region45: #{tpu_custom_call.1} parent=35 // pred_check
          %p411 = pneg %p156
        $region46: #{tpu_custom_call.1} parent=35 // pred_check_branch
          %413 = sbr.rel (%p411) target = $region48
        $region47: #{tpu_custom_call.1} parent=35 // pred_region
          %s415 = ssub.s32 128, 128
          %416 = vsyncadd %s407, %s415
          %s417 = sadd.s32 %s29, %s28
          %s418 = smul.addr %s417, 128
          %s419 = scalar_lea.hbm %s4, %s418
          %s421 = sshll.u32 %s410, 4
          %s422 = int_to_ptr.vmem [resolvable:$true] %s421
          %424 = dma.vmem_to_hbm [thread:$0]  %s422, 128, %s419, %s407
        $region48: #{tpu_custom_call.1} parent=35 // pred_fallthru
          _
      $region36: #{tpu_custom_call.1} parent=5 // pred_fallthru
        _
      %p425 = scmp.le.s32.totalorder 2, %s19
      // Predicated region
      $region49: #{tpu_custom_call.1} parent=5 // pred_check
        %p426 = pneg %p425
      $region50: #{tpu_custom_call.1} parent=5 // pred_check_branch
        %428 = sbr.rel (%p426) target = $region52
      $region51: #{tpu_custom_call.1} parent=5 // pred_region
        %s429 = ssub.s32 %s19, 2
        // Predicated region
        $region53: #{tpu_custom_call.1} parent=51 // pred_check
          %p430 = pneg %p162
        $region54: #{tpu_custom_call.1} parent=51 // pred_check_branch
          %432 = sbr.rel (%p430) target = $region56
        $region55: #{tpu_custom_call.1} parent=51 // pred_region
          %s433 = sand.u32 %s147, 1
          %s434 = scalar_lea.sflag [#allocation5], %s433
          %s435 = sand.u32 %s147, 1
          %s436 = smul.addr %s435, 8
          %s437 = scalar_lea.vmem [#allocation8], %s436
          %438 = dma.done %s434, 128
        $region56: #{tpu_custom_call.1} parent=51 // pred_fallthru
          _
      $region52: #{tpu_custom_call.1} parent=5 // pred_fallthru
        _
    $region6: #{tpu_custom_call.1} parent=1 // loop_footer
      %s23 = sadd.s32 1, %s19
    $region7: #{tpu_custom_call.1} parent=1 // loop_footer_branch
      %18 = sbr.rel target = $region3
    $region8: #{tpu_custom_call.1} parent=1 // loop_exit
      _
    %439 = vsyncpa [#allocation4], 1
    %s440 = scalar_lea.sflag [#allocation4], 1
    %441 = vsyncpa %s440, 1
    %442 = vsyncpa [#allocation7], 1
    %s443 = scalar_lea.sflag [#allocation7], 1
    %444 = vsyncpa %s443, 1
    %445 = vsyncpa [#allocation5], 1
    %s446 = scalar_lea.sflag [#allocation5], 1
    %447 = vsyncpa %s446, 1

</llo_original>
